<compile_context>
chip_gen: v7x
topology: tpu7x:2x2x1
jax: 0.10.0
libtpu: 0.0.40
codegen_flags: <defaults>
</compile_context>

<pallas_src>
import jax
import jax.numpy as jnp
from jax.experimental import pallas as pl
from jax.experimental.pallas import tpu as pltpu


def lstm_seq_kernel(x_ref, h0_ref, c0_ref, wx_ref, wh_ref, b_ref,
                    hseq_ref, cT_ref):
    # x_ref   : (T, Din)   all flattened step inputs (VMEM-resident)
    # h0/c0   : (1, H)     initial hidden / context
    # wx_ref  : (Din, 4H)  fused gate weights for x (columns: f|i|s|o)
    # wh_ref  : (H,   4H)  fused gate weights for h
    # b_ref   : (1,   4H)  pre-summed bias (bx + bh)
    # hseq_ref: (T, H)     per-step hidden outputs (single writeback)
    # cT_ref  : (1, H)     final context
    T = x_ref.shape[0]
    H = h0_ref.shape[-1]
    G = 4 * H

    # Hoisted input projection: one (T, Din) x (Din, 4H) matmul for all steps.
    xg = (jnp.dot(x_ref[...], wx_ref[...], preferred_element_type=jnp.float32)
          + b_ref[...])                                   # (T, 4H)

    # Per-lane activation constants, hoisted out of the time loop.
    # sigmoid(x) = 0.5 * tanh(0.5 * x) + 0.5   (f, i, o lanes)
    # tanh(x)    = 1.0 * tanh(1.0 * x) + 0.0   (s lanes: [2H, 3H))
    lane = jax.lax.broadcasted_iota(jnp.int32, (1, G), 1)
    is_s = (lane >= 2 * H) & (lane < 3 * H)
    scale = jnp.where(is_s, jnp.float32(1.0), jnp.float32(0.5))   # pre & post
    bias = jnp.where(is_s, jnp.float32(0.0), jnp.float32(0.5))

    wh = wh_ref[...]          # keep the recurrent weights in vregs
    h = h0_ref[...]           # (1, H) f32 carry
    c = c0_ref[...]           # (1, H) f32 carry

    hs = []
    for t in range(T):        # T is small & static: full unroll, LLO-visible
        gates = xg[t:t + 1, :] + jnp.dot(h, wh,
                                         preferred_element_type=jnp.float32)
        act = jnp.tanh(gates * scale) * scale + bias      # one EUP issue
        f = act[:, 0 * H:1 * H]
        i = act[:, 1 * H:2 * H]
        s = act[:, 2 * H:3 * H]
        o = act[:, 3 * H:4 * H]
        c = f * c + i * s
        h = jnp.tanh(c) * o
        hs.append(h)

    # Single writeback of the whole hidden sequence + final context.
    hseq_ref[...] = jnp.concatenate(hs, axis=0).astype(hseq_ref.dtype)
    cT_ref[...] = c.astype(cT_ref.dtype)


def lstm_seq(x_seq, h0, c0, wx_f, wh_f, b_f):
    """Run T LSTM-cell steps in a single pallas_call (grid collapsed to 1).

    x_seq: (T, Din)  one flattened input per step (== x.view(-1) per forward())
    h0,c0: (H,)      initial hidden / context
    wx_f : (Din, 4H) fused gate weights (gate g in columns g*H:(g+1)*H)
    wh_f : (H,   4H)
    b_f  : (1,   4H) pre-summed bias
    Returns (h_seq (T,H), h_final (H,), c_final (H,)).
    """
    T, Din = x_seq.shape
    H = h0.shape[0]
    G = 4 * H

    x2 = x_seq.astype(jnp.float32)
    h0_2 = h0.reshape(1, H).astype(jnp.float32)
    c0_2 = c0.reshape(1, H).astype(jnp.float32)

    grid_spec = pltpu.PrefetchScalarGridSpec(
        num_scalar_prefetch=0,
        grid=(1,),                                    # whole recurrence in one step
        in_specs=[
            pl.BlockSpec((T, Din), lambda g: (0, 0)),  # full x slab resident
            pl.BlockSpec((1, H), lambda g: (0, 0)),    # h0
            pl.BlockSpec((1, H), lambda g: (0, 0)),    # c0
            pl.BlockSpec((Din, G), lambda g: (0, 0)),  # Wx (f,i,s,o fused)
            pl.BlockSpec((H, G), lambda g: (0, 0)),    # Wh
            pl.BlockSpec((1, G), lambda g: (0, 0)),    # bias (bx + bh)
        ],
        out_specs=(
            pl.BlockSpec((T, H), lambda g: (0, 0)),    # h sequence
            pl.BlockSpec((1, H), lambda g: (0, 0)),    # final c
        ),
    )

    h_seq, c_T = pl.pallas_call(
        lstm_seq_kernel,
        out_shape=(jax.ShapeDtypeStruct((T, H), jnp.float32),
                   jax.ShapeDtypeStruct((1, H), jnp.float32)),
        grid_spec=grid_spec,
        compiler_params=pltpu.CompilerParams(
            dimension_semantics=("arbitrary",)),
    )(x2, h0_2, c0_2, wx_f, wh_f, b_f)

    return h_seq, h_seq[-1], c_T.reshape(H)


def lstm_cell_ref(x, h, c, wx, wh, bx, bh):
    """Pure-JAX single-step reference mirroring the PyTorch forward()."""
    def gate(g):
        return x @ wx[g] + bx[g] + h @ wh[g] + bh[g]
    f = jax.nn.sigmoid(gate(0))
    i = jax.nn.sigmoid(gate(1))
    s = jnp.tanh(gate(2))
    o = jax.nn.sigmoid(gate(3))
    c_new = f * c + i * s
    h_new = jnp.tanh(c_new) * o
    return h_new, c_new


if __name__ == "__main__":
    # Module hyperparameters (consistent with __init__):
    size, hidden, batch, prev, rate = 4, 16, 2, 2, 0.1
    Din = size * prev * batch      # in_features of the *_input Linears = 16
    H = hidden * batch             # hidden_size = 32  (=> 4H = 128, lane-dense)
    T = 8                          # number of forward() calls (sequence length)

    key = jax.random.PRNGKey(0)
    kx, kwx, kwh, kbx, kbh = jax.random.split(key, 5)

    # Deterministic parameter init (PyTorch Linear-style uniform bounds).
    # wx[g]: (Din, H) pre-transposed weight of the g-th *_input Linear, etc.
    bound_in = 1.0 / (Din ** 0.5)
    bound_h = 1.0 / (H ** 0.5)
    wx = jax.random.uniform(kwx, (4, Din, H), jnp.float32, -bound_in, bound_in)
    wh = jax.random.uniform(kwh, (4, H, H), jnp.float32, -bound_h, bound_h)
    bx = jax.random.uniform(kbx, (4, H), jnp.float32, -bound_in, bound_in)
    bh = jax.random.uniform(kbh, (4, H), jnp.float32, -bound_h, bound_h)

    # Fused-gate weight packing + bias pre-sum, done ONCE outside the kernel.
    wx_f = jnp.transpose(wx, (1, 0, 2)).reshape(Din, 4 * H)   # (Din, 4H)
    wh_f = jnp.transpose(wh, (1, 0, 2)).reshape(H, 4 * H)     # (H,   4H)
    b_f = (bx + bh).reshape(1, 4 * H)                         # (1,   4H)

    # Inputs: T steps, each mirrors x.detach().view(-1) of a (prev,batch,size)
    # tensor (numel == Din).
    x_in = jax.random.normal(kx, (T, prev, batch, size), jnp.float32)
    x_seq = x_in.reshape(T, -1)

    # Initial state: hidden = zeros (__init__), context = zeros (reset()).
    h0 = jnp.zeros((H,), jnp.float32)
    c0 = jnp.zeros((H,), jnp.float32)

    h_seq, h_T, c_T = lstm_seq(x_seq, h0, c0, wx_f, wh_f, b_f)
    h_seq = jax.block_until_ready(h_seq)
    h_T = jax.block_until_ready(h_T)
    c_T = jax.block_until_ready(c_T)

    # Pure-JAX reference: unrolled per-step recurrence.
    h_ref, c_ref = h0, c0
    hs_ref = []
    for t in range(T):
        h_ref, c_ref = lstm_cell_ref(x_seq[t], h_ref, c_ref, wx, wh, bx, bh)
        hs_ref.append(h_ref)
    hs_ref = jnp.stack(hs_ref)

    # Tolerance slightly looser than 1e-5: kernel sigmoid uses the exact
    # identity 0.5*(tanh(x/2)+1), which can differ from exp-based sigmoid at
    # the ~1e-7/step level.
    assert h_seq.shape == (T, H) and h_T.shape == (H,) and c_T.shape == (H,)
    assert jnp.allclose(h_seq, hs_ref, atol=5e-5, rtol=5e-5)
    assert jnp.allclose(h_T, h_ref, atol=5e-5, rtol=5e-5)
    assert jnp.allclose(c_T, c_ref, atol=5e-5, rtol=5e-5)

    print("KERNEL_OK")
</pallas_src>

<mosaic_0001>
module attributes {stable_mosaic.version = 11 : i64} {
  func.func @lstm_seq_kernel(%arg0: i32, %arg1: memref<8x16xf32, #tpu.memory_space<vmem>>, %arg2: memref<1x32xf32, #tpu.memory_space<vmem>>, %arg3: memref<1x32xf32, #tpu.memory_space<vmem>>, %arg4: memref<16x128xf32, #tpu.memory_space<vmem>>, %arg5: memref<32x128xf32, #tpu.memory_space<vmem>>, %arg6: memref<1x128xf32, #tpu.memory_space<vmem>>, %arg7: memref<8x32xf32, #tpu.memory_space<vmem>>, %arg8: memref<1x32xf32, #tpu.memory_space<vmem>>) attributes {dimension_semantics = [#tpu.dimension_semantics<arbitrary>], iteration_bounds = array<i64: 1>, scalar_prefetch = 0 : i64, scratch_operands = 0 : i64, tpu.core_type = #tpu.core_type<tc>, window_params = [{pipeline_mode = #tpu.pipeline_mode<synchronous>, transform_indices = @transform_0, window_bounds = array<i64: 8, 16>}, {pipeline_mode = #tpu.pipeline_mode<synchronous>, transform_indices = @transform_1, window_bounds = array<i64: 1, 32>}, {pipeline_mode = #tpu.pipeline_mode<synchronous>, transform_indices = @transform_2, window_bounds = array<i64: 1, 32>}, {pipeline_mode = #tpu.pipeline_mode<synchronous>, transform_indices = @transform_3, window_bounds = array<i64: 16, 128>}, {pipeline_mode = #tpu.pipeline_mode<synchronous>, transform_indices = @transform_4, window_bounds = array<i64: 32, 128>}, {pipeline_mode = #tpu.pipeline_mode<synchronous>, transform_indices = @transform_5, window_bounds = array<i64: 1, 128>}, {pipeline_mode = #tpu.pipeline_mode<synchronous>, transform_indices = @transform_6, window_bounds = array<i64: 8, 32>}, {pipeline_mode = #tpu.pipeline_mode<synchronous>, transform_indices = @transform_7, window_bounds = array<i64: 1, 32>}]} {
    %c0 = arith.constant 0 : index
    %c0_0 = arith.constant 0 : index
    %0 = vector.load %arg1[%c0, %c0_0] : memref<8x16xf32, #tpu.memory_space<vmem>>, vector<8x16xf32>
    %c0_1 = arith.constant 0 : index
    %c0_2 = arith.constant 0 : index
    %1 = vector.load %arg4[%c0_1, %c0_2] : memref<16x128xf32, #tpu.memory_space<vmem>>, vector<16x128xf32>
    %cst = arith.constant dense<0.000000e+00> : vector<8x128xf32>
    %2 = tpu.matmul %0, %1, %cst {dimension_numbers = #tpu.dot_dimension_numbers<[1], [0], [0], [1], [0, 0, 1, 1], [], []>} : vector<8x16xf32>, vector<16x128xf32>, vector<8x128xf32> -> vector<8x128xf32>
    %c0_3 = arith.constant 0 : index
    %c0_4 = arith.constant 0 : index
    %3 = vector.load %arg6[%c0_3, %c0_4] : memref<1x128xf32, #tpu.memory_space<vmem>>, vector<1x128xf32>
    %4 = vector.broadcast %3 : vector<1x128xf32> to vector<8x128xf32>
    %5 = arith.addf %2, %4 : vector<8x128xf32>
    %6 = tpu.iota {dimensions = array<i32: 1>} : vector<1x128xi32>
    %c64_i32 = arith.constant 64 : i32
    %7 = vector.broadcast %c64_i32 : i32 to vector<1x128xi32>
    %8 = arith.cmpi sge, %6, %7 : vector<1x128xi32>
    %c96_i32 = arith.constant 96 : i32
    %9 = vector.broadcast %c96_i32 : i32 to vector<1x128xi32>
    %10 = arith.cmpi slt, %6, %9 : vector<1x128xi32>
    %11 = arith.andi %8, %10 : vector<1x128xi1>
    %cst_5 = arith.constant 1.000000e+00 : f32
    %cst_6 = arith.constant 5.000000e-01 : f32
    %12 = vector.broadcast %cst_5 : f32 to vector<1x128xf32>
    %13 = vector.broadcast %cst_6 : f32 to vector<1x128xf32>
    %14 = arith.select %11, %12, %13 : vector<1x128xi1>, vector<1x128xf32>
    %cst_7 = arith.constant 0.000000e+00 : f32
    %cst_8 = arith.constant 5.000000e-01 : f32
    %15 = vector.broadcast %cst_7 : f32 to vector<1x128xf32>
    %16 = vector.broadcast %cst_8 : f32 to vector<1x128xf32>
    %17 = arith.select %11, %15, %16 : vector<1x128xi1>, vector<1x128xf32>
    %c0_9 = arith.constant 0 : index
    %c0_10 = arith.constant 0 : index
    %18 = vector.load %arg5[%c0_9, %c0_10] : memref<32x128xf32, #tpu.memory_space<vmem>>, vector<32x128xf32>
    %c0_11 = arith.constant 0 : index
    %c0_12 = arith.constant 0 : index
    %19 = vector.load %arg2[%c0_11, %c0_12] : memref<1x32xf32, #tpu.memory_space<vmem>>, vector<1x32xf32>
    %c0_13 = arith.constant 0 : index
    %c0_14 = arith.constant 0 : index
    %20 = vector.load %arg3[%c0_13, %c0_14] : memref<1x32xf32, #tpu.memory_space<vmem>>, vector<1x32xf32>
    %21 = vector.extract_strided_slice %5 {offsets = [0, 0], sizes = [1, 128], strides = [1, 1]} : vector<8x128xf32> to vector<1x128xf32>
    %cst_15 = arith.constant dense<0.000000e+00> : vector<1x128xf32>
    %22 = tpu.matmul %19, %18, %cst_15 {dimension_numbers = #tpu.dot_dimension_numbers<[1], [0], [0], [1], [0, 0, 1, 1], [], []>} : vector<1x32xf32>, vector<32x128xf32>, vector<1x128xf32> -> vector<1x128xf32>
    %23 = arith.addf %21, %22 : vector<1x128xf32>
    %24 = arith.mulf %23, %14 : vector<1x128xf32>
    %25 = math.tanh %24 : vector<1x128xf32>
    %26 = arith.mulf %25, %14 : vector<1x128xf32>
    %27 = arith.addf %26, %17 : vector<1x128xf32>
    %28 = vector.extract_strided_slice %27 {offsets = [0, 0], sizes = [1, 32], strides = [1, 1]} : vector<1x128xf32> to vector<1x32xf32>
    %29 = vector.extract_strided_slice %27 {offsets = [0, 32], sizes = [1, 32], strides = [1, 1]} : vector<1x128xf32> to vector<1x32xf32>
    %30 = vector.extract_strided_slice %27 {offsets = [0, 64], sizes = [1, 32], strides = [1, 1]} : vector<1x128xf32> to vector<1x32xf32>
    %31 = vector.extract_strided_slice %27 {offsets = [0, 96], sizes = [1, 32], strides = [1, 1]} : vector<1x128xf32> to vector<1x32xf32>
    %32 = arith.mulf %28, %20 : vector<1x32xf32>
    %33 = arith.mulf %29, %30 : vector<1x32xf32>
    %34 = arith.addf %32, %33 : vector<1x32xf32>
    %35 = math.tanh %34 : vector<1x32xf32>
    %36 = arith.mulf %35, %31 : vector<1x32xf32>
    %37 = vector.extract_strided_slice %5 {offsets = [1, 0], sizes = [1, 128], strides = [1, 1]} : vector<8x128xf32> to vector<1x128xf32>
    %cst_16 = arith.constant dense<0.000000e+00> : vector<1x128xf32>
    %38 = tpu.matmul %36, %18, %cst_16 {dimension_numbers = #tpu.dot_dimension_numbers<[1], [0], [0], [1], [0, 0, 1, 1], [], []>} : vector<1x32xf32>, vector<32x128xf32>, vector<1x128xf32> -> vector<1x128xf32>
    %39 = arith.addf %37, %38 : vector<1x128xf32>
    %40 = arith.mulf %39, %14 : vector<1x128xf32>
    %41 = math.tanh %40 : vector<1x128xf32>
    %42 = arith.mulf %41, %14 : vector<1x128xf32>
    %43 = arith.addf %42, %17 : vector<1x128xf32>
    %44 = vector.extract_strided_slice %43 {offsets = [0, 0], sizes = [1, 32], strides = [1, 1]} : vector<1x128xf32> to vector<1x32xf32>
    %45 = vector.extract_strided_slice %43 {offsets = [0, 32], sizes = [1, 32], strides = [1, 1]} : vector<1x128xf32> to vector<1x32xf32>
    %46 = vector.extract_strided_slice %43 {offsets = [0, 64], sizes = [1, 32], strides = [1, 1]} : vector<1x128xf32> to vector<1x32xf32>
    %47 = vector.extract_strided_slice %43 {offsets = [0, 96], sizes = [1, 32], strides = [1, 1]} : vector<1x128xf32> to vector<1x32xf32>
    %48 = arith.mulf %44, %34 : vector<1x32xf32>
    %49 = arith.mulf %45, %46 : vector<1x32xf32>
    %50 = arith.addf %48, %49 : vector<1x32xf32>
    %51 = math.tanh %50 : vector<1x32xf32>
    %52 = arith.mulf %51, %47 : vector<1x32xf32>
    %53 = vector.extract_strided_slice %5 {offsets = [2, 0], sizes = [1, 128], strides = [1, 1]} : vector<8x128xf32> to vector<1x128xf32>
    %cst_17 = arith.constant dense<0.000000e+00> : vector<1x128xf32>
    %54 = tpu.matmul %52, %18, %cst_17 {dimension_numbers = #tpu.dot_dimension_numbers<[1], [0], [0], [1], [0, 0, 1, 1], [], []>} : vector<1x32xf32>, vector<32x128xf32>, vector<1x128xf32> -> vector<1x128xf32>
    %55 = arith.addf %53, %54 : vector<1x128xf32>
    %56 = arith.mulf %55, %14 : vector<1x128xf32>
    %57 = math.tanh %56 : vector<1x128xf32>
    %58 = arith.mulf %57, %14 : vector<1x128xf32>
    %59 = arith.addf %58, %17 : vector<1x128xf32>
    %60 = vector.extract_strided_slice %59 {offsets = [0, 0], sizes = [1, 32], strides = [1, 1]} : vector<1x128xf32> to vector<1x32xf32>
    %61 = vector.extract_strided_slice %59 {offsets = [0, 32], sizes = [1, 32], strides = [1, 1]} : vector<1x128xf32> to vector<1x32xf32>
    %62 = vector.extract_strided_slice %59 {offsets = [0, 64], sizes = [1, 32], strides = [1, 1]} : vector<1x128xf32> to vector<1x32xf32>
    %63 = vector.extract_strided_slice %59 {offsets = [0, 96], sizes = [1, 32], strides = [1, 1]} : vector<1x128xf32> to vector<1x32xf32>
    %64 = arith.mulf %60, %50 : vector<1x32xf32>
    %65 = arith.mulf %61, %62 : vector<1x32xf32>
    %66 = arith.addf %64, %65 : vector<1x32xf32>
    %67 = math.tanh %66 : vector<1x32xf32>
    %68 = arith.mulf %67, %63 : vector<1x32xf32>
    %69 = vector.extract_strided_slice %5 {offsets = [3, 0], sizes = [1, 128], strides = [1, 1]} : vector<8x128xf32> to vector<1x128xf32>
    %cst_18 = arith.constant dense<0.000000e+00> : vector<1x128xf32>
    %70 = tpu.matmul %68, %18, %cst_18 {dimension_numbers = #tpu.dot_dimension_numbers<[1], [0], [0], [1], [0, 0, 1, 1], [], []>} : vector<1x32xf32>, vector<32x128xf32>, vector<1x128xf32> -> vector<1x128xf32>
    %71 = arith.addf %69, %70 : vector<1x128xf32>
    %72 = arith.mulf %71, %14 : vector<1x128xf32>
    %73 = math.tanh %72 : vector<1x128xf32>
    %74 = arith.mulf %73, %14 : vector<1x128xf32>
    %75 = arith.addf %74, %17 : vector<1x128xf32>
    %76 = vector.extract_strided_slice %75 {offsets = [0, 0], sizes = [1, 32], strides = [1, 1]} : vector<1x128xf32> to vector<1x32xf32>
    %77 = vector.extract_strided_slice %75 {offsets = [0, 32], sizes = [1, 32], strides = [1, 1]} : vector<1x128xf32> to vector<1x32xf32>
    %78 = vector.extract_strided_slice %75 {offsets = [0, 64], sizes = [1, 32], strides = [1, 1]} : vector<1x128xf32> to vector<1x32xf32>
    %79 = vector.extract_strided_slice %75 {offsets = [0, 96], sizes = [1, 32], strides = [1, 1]} : vector<1x128xf32> to vector<1x32xf32>
    %80 = arith.mulf %76, %66 : vector<1x32xf32>
    %81 = arith.mulf %77, %78 : vector<1x32xf32>
    %82 = arith.addf %80, %81 : vector<1x32xf32>
    %83 = math.tanh %82 : vector<1x32xf32>
    %84 = arith.mulf %83, %79 : vector<1x32xf32>
    %85 = vector.extract_strided_slice %5 {offsets = [4, 0], sizes = [1, 128], strides = [1, 1]} : vector<8x128xf32> to vector<1x128xf32>
    %cst_19 = arith.constant dense<0.000000e+00> : vector<1x128xf32>
    %86 = tpu.matmul %84, %18, %cst_19 {dimension_numbers = #tpu.dot_dimension_numbers<[1], [0], [0], [1], [0, 0, 1, 1], [], []>} : vector<1x32xf32>, vector<32x128xf32>, vector<1x128xf32> -> vector<1x128xf32>
    %87 = arith.addf %85, %86 : vector<1x128xf32>
    %88 = arith.mulf %87, %14 : vector<1x128xf32>
    %89 = math.tanh %88 : vector<1x128xf32>
    %90 = arith.mulf %89, %14 : vector<1x128xf32>
    %91 = arith.addf %90, %17 : vector<1x128xf32>
    %92 = vector.extract_strided_slice %91 {offsets = [0, 0], sizes = [1, 32], strides = [1, 1]} : vector<1x128xf32> to vector<1x32xf32>
    %93 = vector.extract_strided_slice %91 {offsets = [0, 32], sizes = [1, 32], strides = [1, 1]} : vector<1x128xf32> to vector<1x32xf32>
    %94 = vector.extract_strided_slice %91 {offsets = [0, 64], sizes = [1, 32], strides = [1, 1]} : vector<1x128xf32> to vector<1x32xf32>
    %95 = vector.extract_strided_slice %91 {offsets = [0, 96], sizes = [1, 32], strides = [1, 1]} : vector<1x128xf32> to vector<1x32xf32>
    %96 = arith.mulf %92, %82 : vector<1x32xf32>
    %97 = arith.mulf %93, %94 : vector<1x32xf32>
    %98 = arith.addf %96, %97 : vector<1x32xf32>
    %99 = math.tanh %98 : vector<1x32xf32>
    %100 = arith.mulf %99, %95 : vector<1x32xf32>
    %101 = vector.extract_strided_slice %5 {offsets = [5, 0], sizes = [1, 128], strides = [1, 1]} : vector<8x128xf32> to vector<1x128xf32>
    %cst_20 = arith.constant dense<0.000000e+00> : vector<1x128xf32>
    %102 = tpu.matmul %100, %18, %cst_20 {dimension_numbers = #tpu.dot_dimension_numbers<[1], [0], [0], [1], [0, 0, 1, 1], [], []>} : vector<1x32xf32>, vector<32x128xf32>, vector<1x128xf32> -> vector<1x128xf32>
    %103 = arith.addf %101, %102 : vector<1x128xf32>
    %104 = arith.mulf %103, %14 : vector<1x128xf32>
    %105 = math.tanh %104 : vector<1x128xf32>
    %106 = arith.mulf %105, %14 : vector<1x128xf32>
    %107 = arith.addf %106, %17 : vector<1x128xf32>
    %108 = vector.extract_strided_slice %107 {offsets = [0, 0], sizes = [1, 32], strides = [1, 1]} : vector<1x128xf32> to vector<1x32xf32>
    %109 = vector.extract_strided_slice %107 {offsets = [0, 32], sizes = [1, 32], strides = [1, 1]} : vector<1x128xf32> to vector<1x32xf32>
    %110 = vector.extract_strided_slice %107 {offsets = [0, 64], sizes = [1, 32], strides = [1, 1]} : vector<1x128xf32> to vector<1x32xf32>
    %111 = vector.extract_strided_slice %107 {offsets = [0, 96], sizes = [1, 32], strides = [1, 1]} : vector<1x128xf32> to vector<1x32xf32>
    %112 = arith.mulf %108, %98 : vector<1x32xf32>
    %113 = arith.mulf %109, %110 : vector<1x32xf32>
    %114 = arith.addf %112, %113 : vector<1x32xf32>
    %115 = math.tanh %114 : vector<1x32xf32>
    %116 = arith.mulf %115, %111 : vector<1x32xf32>
    %117 = vector.extract_strided_slice %5 {offsets = [6, 0], sizes = [1, 128], strides = [1, 1]} : vector<8x128xf32> to vector<1x128xf32>
    %cst_21 = arith.constant dense<0.000000e+00> : vector<1x128xf32>
    %118 = tpu.matmul %116, %18, %cst_21 {dimension_numbers = #tpu.dot_dimension_numbers<[1], [0], [0], [1], [0, 0, 1, 1], [], []>} : vector<1x32xf32>, vector<32x128xf32>, vector<1x128xf32> -> vector<1x128xf32>
    %119 = arith.addf %117, %118 : vector<1x128xf32>
    %120 = arith.mulf %119, %14 : vector<1x128xf32>
    %121 = math.tanh %120 : vector<1x128xf32>
    %122 = arith.mulf %121, %14 : vector<1x128xf32>
    %123 = arith.addf %122, %17 : vector<1x128xf32>
    %124 = vector.extract_strided_slice %123 {offsets = [0, 0], sizes = [1, 32], strides = [1, 1]} : vector<1x128xf32> to vector<1x32xf32>
    %125 = vector.extract_strided_slice %123 {offsets = [0, 32], sizes = [1, 32], strides = [1, 1]} : vector<1x128xf32> to vector<1x32xf32>
    %126 = vector.extract_strided_slice %123 {offsets = [0, 64], sizes = [1, 32], strides = [1, 1]} : vector<1x128xf32> to vector<1x32xf32>
    %127 = vector.extract_strided_slice %123 {offsets = [0, 96], sizes = [1, 32], strides = [1, 1]} : vector<1x128xf32> to vector<1x32xf32>
    %128 = arith.mulf %124, %114 : vector<1x32xf32>
    %129 = arith.mulf %125, %126 : vector<1x32xf32>
    %130 = arith.addf %128, %129 : vector<1x32xf32>
    %131 = math.tanh %130 : vector<1x32xf32>
    %132 = arith.mulf %131, %127 : vector<1x32xf32>
    %133 = vector.extract_strided_slice %5 {offsets = [7, 0], sizes = [1, 128], strides = [1, 1]} : vector<8x128xf32> to vector<1x128xf32>
    %cst_22 = arith.constant dense<0.000000e+00> : vector<1x128xf32>
    %134 = tpu.matmul %132, %18, %cst_22 {dimension_numbers = #tpu.dot_dimension_numbers<[1], [0], [0], [1], [0, 0, 1, 1], [], []>} : vector<1x32xf32>, vector<32x128xf32>, vector<1x128xf32> -> vector<1x128xf32>
    %135 = arith.addf %133, %134 : vector<1x128xf32>
    %136 = arith.mulf %135, %14 : vector<1x128xf32>
    %137 = math.tanh %136 : vector<1x128xf32>
    %138 = arith.mulf %137, %14 : vector<1x128xf32>
    %139 = arith.addf %138, %17 : vector<1x128xf32>
    %140 = vector.extract_strided_slice %139 {offsets = [0, 0], sizes = [1, 32], strides = [1, 1]} : vector<1x128xf32> to vector<1x32xf32>
    %141 = vector.extract_strided_slice %139 {offsets = [0, 32], sizes = [1, 32], strides = [1, 1]} : vector<1x128xf32> to vector<1x32xf32>
    %142 = vector.extract_strided_slice %139 {offsets = [0, 64], sizes = [1, 32], strides = [1, 1]} : vector<1x128xf32> to vector<1x32xf32>
    %143 = vector.extract_strided_slice %139 {offsets = [0, 96], sizes = [1, 32], strides = [1, 1]} : vector<1x128xf32> to vector<1x32xf32>
    %144 = arith.mulf %140, %130 : vector<1x32xf32>
    %145 = arith.mulf %141, %142 : vector<1x32xf32>
    %146 = arith.addf %144, %145 : vector<1x32xf32>
    %147 = math.tanh %146 : vector<1x32xf32>
    %148 = arith.mulf %147, %143 : vector<1x32xf32>
    %149 = tpu.concatenate %36, %52, %68, %84, %100, %116, %132, %148 in 0 : vector<1x32xf32>, vector<1x32xf32>, vector<1x32xf32>, vector<1x32xf32>, vector<1x32xf32>, vector<1x32xf32>, vector<1x32xf32>, vector<1x32xf32> -> vector<8x32xf32>
    %c0_23 = arith.constant 0 : index
    %c0_24 = arith.constant 0 : index
    %150 = vector.load %arg7[%c0_23, %c0_24] : memref<8x32xf32, #tpu.memory_space<vmem>>, vector<8x32xf32>
    tpu.vector_store %arg7[%c0_23, %c0_24], %149 {strides = array<i32>} : memref<8x32xf32, #tpu.memory_space<vmem>>, vector<8x32xf32>,
    %c0_25 = arith.constant 0 : index
    %c0_26 = arith.constant 0 : index
    %151 = vector.load %arg8[%c0_25, %c0_26] : memref<1x32xf32, #tpu.memory_space<vmem>>, vector<1x32xf32>
    tpu.vector_store %arg8[%c0_25, %c0_26], %146 {strides = array<i32>} : memref<1x32xf32, #tpu.memory_space<vmem>>, vector<1x32xf32>,
    return
  }
  func.func @transform_0(%arg0: i32) -> (i32, i32) {
    %c0_i32 = arith.constant 0 : i32
    %c0_i32_0 = arith.constant 0 : i32
    %c0_i32_1 = arith.constant 0 : i32
    return %c0_i32, %c0_i32_0 : i32, i32
  }
  func.func @transform_1(%arg0: i32) -> (i32, i32) {
    %c0_i32 = arith.constant 0 : i32
    %c0_i32_0 = arith.constant 0 : i32
    %c0_i32_1 = arith.constant 0 : i32
    return %c0_i32, %c0_i32_0 : i32, i32
  }
  func.func @transform_2(%arg0: i32) -> (i32, i32) {
    %c0_i32 = arith.constant 0 : i32
    %c0_i32_0 = arith.constant 0 : i32
    %c0_i32_1 = arith.constant 0 : i32
    return %c0_i32, %c0_i32_0 : i32, i32
  }
  func.func @transform_3(%arg0: i32) -> (i32, i32) {
    %c0_i32 = arith.constant 0 : i32
    %c0_i32_0 = arith.constant 0 : i32
    %c0_i32_1 = arith.constant 0 : i32
    return %c0_i32, %c0_i32_0 : i32, i32
  }
  func.func @transform_4(%arg0: i32) -> (i32, i32) {
    %c0_i32 = arith.constant 0 : i32
    %c0_i32_0 = arith.constant 0 : i32
    %c0_i32_1 = arith.constant 0 : i32
    return %c0_i32, %c0_i32_0 : i32, i32
  }
  func.func @transform_5(%arg0: i32) -> (i32, i32) {
    %c0_i32 = arith.constant 0 : i32
    %c0_i32_0 = arith.constant 0 : i32
    %c0_i32_1 = arith.constant 0 : i32
    return %c0_i32, %c0_i32_0 : i32, i32
  }
  func.func @transform_6(%arg0: i32) -> (i32, i32) {
    %c0_i32 = arith.constant 0 : i32
    %c0_i32_0 = arith.constant 0 : i32
    %c0_i32_1 = arith.constant 0 : i32
    return %c0_i32, %c0_i32_0 : i32, i32
  }
  func.func @transform_7(%arg0: i32) -> (i32, i32) {
    %c0_i32 = arith.constant 0 : i32
    %c0_i32_0 = arith.constant 0 : i32
    %c0_i32_1 = arith.constant 0 : i32
    return %c0_i32, %c0_i32_0 : i32, i32
  }
}

</mosaic_0001>

<llo_original>
// kernel: tpu_custom_call.1
$region0: #{tpu_custom_call.1}
  #allocation0 [shape = 'u32[]', space=smem, size = 0x4, offset = 0x4, fixed_abs, tag = 'smem constant byte address 0x4 - core index']
  #allocation1 [shape = 'u32[144,128]{1,0:T(1,128)}', space=vmem, size = 0x12000, scoped, tag = 'internal scratch']
  %s0 = inlined_call_operand.hbm [shape: f32[8,16], index: 0, kind: input, shape index: {}]
  %s1 = inlined_call_operand.vmem [shape: f32[1,32], index: 1, kind: input, shape index: {}]
  %s2 = inlined_call_operand.vmem [shape: f32[1,32], index: 2, kind: input, shape index: {}]
  %s3 = inlined_call_operand.hbm [shape: f32[16,128], index: 3, kind: input, shape index: {}]
  %s4 = inlined_call_operand.hbm [shape: f32[32,128], index: 4, kind: input, shape index: {}]
  %s5 = inlined_call_operand.vmem [shape: f32[1,128], index: 5, kind: input, shape index: {}]
  %s6 = inlined_call_operand.hbm [shape: f32[8,32], index: 6, kind: output, shape index: {0}]
  %s7 = inlined_call_operand.hbm [shape: f32[1,32], index: 7, kind: output, shape index: {1}]
  %8 = xla_tuple %s6, %s7
  %s9 = sld [smem:[#allocation0]]
  $region54: #{tpu_custom_call.1} parent=0
    _
  %s11 = ssub.s32 1, %s9
  %s12 = scalar_select 0, %s11, %s9
  $region1: #{tpu_custom_call.1} parent=0
    #allocation2 [shape = 'u8[4096]{0}', space=vmem, size = 0x1000, scoped, tag = 'input window, operand 0, single buffered']
    #allocation3 [shape = 's32[1]{0}', space=sflag, size = 0x4, scoped, tag = 'scoped memory for tpu_custom_call.1']
    #allocation4 [shape = 's32[1]{0}', space=sflag, size = 0x4, scoped, tag = 'scoped memory for tpu_custom_call.1']
    #allocation5 [shape = 'u8[8192]{0}', space=vmem, size = 0x2000, scoped, tag = 'input window, operand 3, single buffered']
    #allocation6 [shape = 's32[1]{0}', space=sflag, size = 0x4, scoped, tag = 'scoped memory for tpu_custom_call.1']
    #allocation7 [shape = 'u8[16384]{0}', space=vmem, size = 0x4000, scoped, tag = 'input window, operand 4, single buffered']
    #allocation8 [shape = 'u8[4096]{0}', space=vmem, size = 0x1000, scoped, tag = 'output window, operand 0, single buffered']
    #allocation9 [shape = 'u8[512]{0}', space=vmem, size = 0x400, scoped, tag = 'output window, operand 1, single buffered']
    #allocation10 [shape = 's32[1]{0}', space=sflag, size = 0x4, scoped, tag = 'scoped memory for tpu_custom_call.1']
    %13 = vsyncpa [#allocation3], 0
    %14 = vsyncpa [#allocation6], 0
    %15 = vsyncpa [#allocation4], 0
    %16 = vsyncpa [#allocation10], 0
    // Predicated region
    $region2: #{tpu_custom_call.1} parent=1 // pred_check
      _
    $region3: #{tpu_custom_call.1} parent=1 // pred_check_branch
      %18 = sbr.rel (0) target = $region5
    $region4: #{tpu_custom_call.1} parent=1 // pred_region
      %s20 = ssub.s32 128, 128
      %21 = vsyncadd [#allocation3], %s20
      %s23 = sshll.u32 [#allocation2], 4
      %s24 = int_to_ptr.vmem [resolvable:$true] %s23
      %26 = dma.hbm_to_vmem [thread:$0]  %s0, 128, %s24, [#allocation3]
    $region5: #{tpu_custom_call.1} parent=1 // pred_fallthru
      _
    // Predicated region
    $region6: #{tpu_custom_call.1} parent=1 // pred_check
      _
    $region7: #{tpu_custom_call.1} parent=1 // pred_check_branch
      %28 = sbr.rel (0) target = $region9
    $region8: #{tpu_custom_call.1} parent=1 // pred_region
      _
    $region9: #{tpu_custom_call.1} parent=1 // pred_fallthru
      _
    // Predicated region
    $region10: #{tpu_custom_call.1} parent=1 // pred_check
      _
    $region11: #{tpu_custom_call.1} parent=1 // pred_check_branch
      %30 = sbr.rel (0) target = $region13
    $region12: #{tpu_custom_call.1} parent=1 // pred_region
      _
    $region13: #{tpu_custom_call.1} parent=1 // pred_fallthru
      _
    // Predicated region
    $region14: #{tpu_custom_call.1} parent=1 // pred_check
      _
    $region15: #{tpu_custom_call.1} parent=1 // pred_check_branch
      %32 = sbr.rel (0) target = $region17
    $region16: #{tpu_custom_call.1} parent=1 // pred_region
      %s34 = ssub.s32 256, 256
      %35 = vsyncadd [#allocation6], %s34
      %s36 = sshll.u32 [#allocation5], 4
      %s37 = int_to_ptr.vmem [resolvable:$true] %s36
      %42 = dma.hbm_to_vmem [thread:$0]  %s3, 256, %s37, [#allocation6], 128, 128, 8
    $region17: #{tpu_custom_call.1} parent=1 // pred_fallthru
      _
    // Predicated region
    $region18: #{tpu_custom_call.1} parent=1 // pred_check
      _
    $region19: #{tpu_custom_call.1} parent=1 // pred_check_branch
      %44 = sbr.rel (0) target = $region21
    $region20: #{tpu_custom_call.1} parent=1 // pred_region
      %s46 = ssub.s32 512, 512
      %47 = vsyncadd [#allocation6], %s46
      %s48 = sshll.u32 [#allocation7], 4
      %s49 = int_to_ptr.vmem [resolvable:$true] %s48
      %54 = dma.hbm_to_vmem [thread:$0]  %s4, 512, %s49, [#allocation6], 128, 128, 8
    $region21: #{tpu_custom_call.1} parent=1 // pred_fallthru
      _
    // Predicated region
    $region22: #{tpu_custom_call.1} parent=1 // pred_check
      _
    $region23: #{tpu_custom_call.1} parent=1 // pred_check_branch
      %56 = sbr.rel (0) target = $region25
    $region24: #{tpu_custom_call.1} parent=1 // pred_region
      _
    $region25: #{tpu_custom_call.1} parent=1 // pred_fallthru
      _
    // Predicated region
    $region26: #{tpu_custom_call.1} parent=1 // pred_check
      _
    $region27: #{tpu_custom_call.1} parent=1 // pred_check_branch
      %58 = sbr.rel (0) target = $region29
    $region28: #{tpu_custom_call.1} parent=1 // pred_region
      %59 = dma.done [#allocation3], 128
    $region29: #{tpu_custom_call.1} parent=1 // pred_fallthru
      _
    // Predicated region
    $region30: #{tpu_custom_call.1} parent=1 // pred_check
      _
    $region31: #{tpu_custom_call.1} parent=1 // pred_check_branch
      %61 = sbr.rel (0) target = $region33
    $region32: #{tpu_custom_call.1} parent=1 // pred_region
      %62 = dma.done [#allocation6], 256
    $region33: #{tpu_custom_call.1} parent=1 // pred_fallthru
      _
    // Predicated region
    $region34: #{tpu_custom_call.1} parent=1 // pred_check
      _
    $region35: #{tpu_custom_call.1} parent=1 // pred_check_branch
      %64 = sbr.rel (0) target = $region37
    $region36: #{tpu_custom_call.1} parent=1 // pred_region
      %65 = dma.done [#allocation6], 512
    $region37: #{tpu_custom_call.1} parent=1 // pred_fallthru
      _
    %v66 = vld [vmem:[#allocation2] sm:$0xff]
    %v67 = vld [vmem:[#allocation5] sm:$0xff]
    %v68 = vld [vmem:[#allocation5 + $0x8] sm:$0xff]
    %v69 = vld [vmem:[%s5] sm:$0x1]
    %v71 = vlaneseq
    %v72 = vshrl.u32 %v71, 7
    %v73 = vsub.s32 0, %v72
    %v74 = vrot.slane %v69, %v73
    %vm76 = vcmask 130048
    %v78 = vsel %vm76, %v66, 0
    %80 = vmatprep.subr.mxu0 0.0
    %81 = vmatpush1.msra.mxu0 %v67
    %82 = vmatprep.subr.mxu0 0.0
    %83 = vmatpush1.msra.mxu0 %v68
    %84 = vmatprep.subr.mxu0 0.0
    %85 = vmatpush1.msra.mxu0 0.0
    %86 = vmatprep.subr.mxu0 0.0
    %87 = vmatpush1.msra.mxu0 0.0
    %88 = vmatprep.subr.mxu0 0.0
    %89 = vmatpush1.msra.mxu0 0.0
    %90 = vmatprep.subr.mxu0 0.0
    %91 = vmatpush1.msra.mxu0 0.0
    %92 = vmatprep.subr.mxu0 0.0
    %93 = vmatpush1.msra.mxu0 0.0
    %94 = vmatprep.subr.mxu0 0.0
    %95 = vmatpush1.msra.mxu0 0.0
    %96 = vmatprep.subr.mxu0 0.0
    %97 = vmatpush1.msra.mxu0 0.0
    %98 = vmatprep.subr.mxu0 0.0
    %99 = vmatpush1.msra.mxu0 0.0
    %100 = vmatprep.subr.mxu0 0.0
    %101 = vmatpush1.msra.mxu0 0.0
    %102 = vmatprep.subr.mxu0 0.0
    %103 = vmatpush1.msra.mxu0 0.0
    %104 = vmatprep.subr.mxu0 0.0
    %105 = vmatpush1.msra.mxu0 0.0
    %106 = vmatprep.subr.mxu0 0.0
    %107 = vmatpush1.msra.mxu0 0.0
    %108 = vmatprep.subr.mxu0 0.0
    %109 = vmatpush1.msra.mxu0 0.0
    %110 = vmatprep.subr.mxu0 0.0
    %111 = vmatpush1.msra.mxu0 0.0
    %112 = vmatprep.subr.mxu0 0.0
    %113 = vmatpush1.msra.mxu0 0.0
    %114 = vmatprep.subr.mxu0 0.0
    %115 = vmatpush1.msra.mxu0 0.0
    %116 = vmatprep.subr.mxu0 0.0
    %117 = vmatpush1.msra.mxu0 0.0
    %118 = vmatprep.subr.mxu0 0.0
    %119 = vmatpush1.msra.mxu0 0.0
    %120 = vmatprep.subr.mxu0 0.0
    %121 = vmatpush1.msra.mxu0 0.0
    %122 = vmatprep.subr.mxu0 0.0
    %123 = vmatpush1.msra.mxu0 0.0
    %124 = vmatprep.subr.mxu0 0.0
    %125 = vmatpush1.msra.mxu0 0.0
    %126 = vmatprep.subr.mxu0 0.0
    %127 = vmatpush1.msra.mxu0 0.0
    %128 = vmatprep.subr.mxu0 0.0
    %129 = vmatpush1.msra.mxu0 0.0
    %130 = vmatprep.subr.mxu0 0.0
    %131 = vmatpush1.msra.mxu0 0.0
    %132 = vmatprep.subr.mxu0 0.0
    %133 = vmatpush1.msra.mxu0 0.0
    %134 = vmatprep.subr.mxu0 0.0
    %135 = vmatpush1.msra.mxu0 0.0
    %136 = vmatprep.subr.mxu0 0.0
    %137 = vmatpush1.msra.mxu0 0.0
    %138 = vmatprep.subr.mxu0 0.0
    %139 = vmatpush1.msra.mxu0 0.0
    %140 = vmatprep.subr.mxu0 0.0
    %141 = vmatpush1.msra.mxu0 0.0
    %142 = vmatprep.subr.mxu0 0.0
    %143 = vmatpush1.msra.mxu0 0.0
    %144 = vmatprep.mubr.f32.mxu0 0.0
    %145 = vmatmul.mubr.f32.gmra.mrb[0].mxu0 %v78
    %v146 = vpop.f32.mrb[0].mxu0
    %v147 = vadd.f32 %v74, %v146
    %v148 = vpop.f32.mrb[0].mxu0
    %149 = vdwg.mxu0
    %v150 = vlaneseq
    %v151 = vand.u32 %v150, 127
    %vm152 = vcmp.ge.s32.totalorder %v151, 64
    %vm153 = vcmp.lt.s32.totalorder %v151, 96
    %vm154 = vmand %vm152, %vm153
    %v155 = vsel %vm154, 1.0, 0.5
    %v156 = vsel %vm154, 0.0, 0.5
    %v157 = vld [vmem:[#allocation7] sm:$0xff]
    %v158 = vld [vmem:[#allocation7 + $0x8] sm:$0xff]
    %v159 = vld [vmem:[#allocation7 + $0x10] sm:$0xff]
    %v160 = vld [vmem:[#allocation7 + $0x18] sm:$0xff]
    %v161 = vld [vmem:[%s1] sm:$0x1]
    %v162 = vld [vmem:[%s2] sm:$0x1]
    %vm163 = vcmask 261120
    %v165 = vsel %vm163, %v161, 0
    %167 = vmatprep.subr.mxu0 0.0
    %168 = vmatpush1.msra.mxu0 %v157
    %169 = vmatprep.subr.mxu0 0.0
    %170 = vmatpush1.msra.mxu0 %v158
    %171 = vmatprep.subr.mxu0 0.0
    %172 = vmatpush1.msra.mxu0 %v159
    %173 = vmatprep.subr.mxu0 0.0
    %174 = vmatpush1.msra.mxu0 %v160
    %175 = vmatprep.subr.mxu0 0.0
    %176 = vmatpush1.msra.mxu0 0.0
    %177 = vmatprep.subr.mxu0 0.0
    %178 = vmatpush1.msra.mxu0 0.0
    %179 = vmatprep.subr.mxu0 0.0
    %180 = vmatpush1.msra.mxu0 0.0
    %181 = vmatprep.subr.mxu0 0.0
    %182 = vmatpush1.msra.mxu0 0.0
    %183 = vmatprep.subr.mxu0 0.0
    %184 = vmatpush1.msra.mxu0 0.0
    %185 = vmatprep.subr.mxu0 0.0
    %186 = vmatpush1.msra.mxu0 0.0
    %187 = vmatprep.subr.mxu0 0.0
    %188 = vmatpush1.msra.mxu0 0.0
    %189 = vmatprep.subr.mxu0 0.0
    %190 = vmatpush1.msra.mxu0 0.0
    %191 = vmatprep.subr.mxu0 0.0
    %192 = vmatpush1.msra.mxu0 0.0
    %193 = vmatprep.subr.mxu0 0.0
    %194 = vmatpush1.msra.mxu0 0.0
    %195 = vmatprep.subr.mxu0 0.0
    %196 = vmatpush1.msra.mxu0 0.0
    %197 = vmatprep.subr.mxu0 0.0
    %198 = vmatpush1.msra.mxu0 0.0
    %199 = vmatprep.subr.mxu0 0.0
    %200 = vmatpush1.msra.mxu0 0.0
    %201 = vmatprep.subr.mxu0 0.0
    %202 = vmatpush1.msra.mxu0 0.0
    %203 = vmatprep.subr.mxu0 0.0
    %204 = vmatpush1.msra.mxu0 0.0
    %205 = vmatprep.subr.mxu0 0.0
    %206 = vmatpush1.msra.mxu0 0.0
    %207 = vmatprep.subr.mxu0 0.0
    %208 = vmatpush1.msra.mxu0 0.0
    %209 = vmatprep.subr.mxu0 0.0
    %210 = vmatpush1.msra.mxu0 0.0
    %211 = vmatprep.subr.mxu0 0.0
    %212 = vmatpush1.msra.mxu0 0.0
    %213 = vmatprep.subr.mxu0 0.0
    %214 = vmatpush1.msra.mxu0 0.0
    %215 = vmatprep.subr.mxu0 0.0
    %216 = vmatpush1.msra.mxu0 0.0
    %217 = vmatprep.subr.mxu0 0.0
    %218 = vmatpush1.msra.mxu0 0.0
    %219 = vmatprep.subr.mxu0 0.0
    %220 = vmatpush1.msra.mxu0 0.0
    %221 = vmatprep.subr.mxu0 0.0
    %222 = vmatpush1.msra.mxu0 0.0
    %223 = vmatprep.subr.mxu0 0.0
    %224 = vmatpush1.msra.mxu0 0.0
    %225 = vmatprep.subr.mxu0 0.0
    %226 = vmatpush1.msra.mxu0 0.0
    %227 = vmatprep.subr.mxu0 0.0
    %228 = vmatpush1.msra.mxu0 0.0
    %229 = vmatprep.subr.mxu0 0.0
    %230 = vmatpush1.msra.mxu0 0.0
    %231 = vmatprep.mubr.f32.mxu0 0.0
    %232 = vmatmul.mubr.f32.gmra.mrb[0].mxu0 %v165
    %v233 = vpop.f32.mrb[0].mxu0
    %v234 = vadd.f32 0.0, %v233
    %v235 = vpop.f32.mrb[0].mxu0
    %236 = vdwg.mxu0
    %v237 = vadd.f32 %v147, %v234
    %v238 = vmul.f32 %v237, %v155
    %v239 = vtanh.pop %v238
    %v240 = vmul.f32 %v239, %v155
    %v241 = vadd.f32 %v240, %v156
    %v242 = vmul.f32 %v241, %v162
    %244 = vrot.lane.b32.xlu0 %v241, 96
    %v245 = vpop.permute.xlu0 %244
    %v247 = vmul.f32 %v241, %v245
    %249 = vrot.lane.b32.xlu0 %v247, 96
    %v250 = vpop.permute.xlu0 %249
    %v252 = vadd.f32 %v242, %v250
    %v253 = vtanh.pop %v252
    %254 = vrot.lane.b32.xlu0 %v241, 32
    %v255 = vpop.permute.xlu0 %254
    %v257 = vmul.f32 %v253, %v255
    %v259 = vsel %vm163, %v257, 0
    %261 = vmatprep.subr.mxu0 0.0
    %262 = vmatpush1.msra.mxu0 %v157
    %263 = vmatprep.subr.mxu0 0.0
    %264 = vmatpush1.msra.mxu0 %v158
    %265 = vmatprep.subr.mxu0 0.0
    %266 = vmatpush1.msra.mxu0 %v159
    %267 = vmatprep.subr.mxu0 0.0
    %268 = vmatpush1.msra.mxu0 %v160
    %269 = vmatprep.subr.mxu0 0.0
    %270 = vmatpush1.msra.mxu0 0.0
    %271 = vmatprep.subr.mxu0 0.0
    %272 = vmatpush1.msra.mxu0 0.0
    %273 = vmatprep.subr.mxu0 0.0
    %274 = vmatpush1.msra.mxu0 0.0
    %275 = vmatprep.subr.mxu0 0.0
    %276 = vmatpush1.msra.mxu0 0.0
    %277 = vmatprep.subr.mxu0 0.0
    %278 = vmatpush1.msra.mxu0 0.0
    %279 = vmatprep.subr.mxu0 0.0
    %280 = vmatpush1.msra.mxu0 0.0
    %281 = vmatprep.subr.mxu0 0.0
    %282 = vmatpush1.msra.mxu0 0.0
    %283 = vmatprep.subr.mxu0 0.0
    %284 = vmatpush1.msra.mxu0 0.0
    %285 = vmatprep.subr.mxu0 0.0
    %286 = vmatpush1.msra.mxu0 0.0
    %287 = vmatprep.subr.mxu0 0.0
    %288 = vmatpush1.msra.mxu0 0.0
    %289 = vmatprep.subr.mxu0 0.0
    %290 = vmatpush1.msra.mxu0 0.0
    %291 = vmatprep.subr.mxu0 0.0
    %292 = vmatpush1.msra.mxu0 0.0
    %293 = vmatprep.subr.mxu0 0.0
    %294 = vmatpush1.msra.mxu0 0.0
    %295 = vmatprep.subr.mxu0 0.0
    %296 = vmatpush1.msra.mxu0 0.0
    %297 = vmatprep.subr.mxu0 0.0
    %298 = vmatpush1.msra.mxu0 0.0
    %299 = vmatprep.subr.mxu0 0.0
    %300 = vmatpush1.msra.mxu0 0.0
    %301 = vmatprep.subr.mxu0 0.0
    %302 = vmatpush1.msra.mxu0 0.0
    %303 = vmatprep.subr.mxu0 0.0
    %304 = vmatpush1.msra.mxu0 0.0
    %305 = vmatprep.subr.mxu0 0.0
    %306 = vmatpush1.msra.mxu0 0.0
    %307 = vmatprep.subr.mxu0 0.0
    %308 = vmatpush1.msra.mxu0 0.0
    %309 = vmatprep.subr.mxu0 0.0
    %310 = vmatpush1.msra.mxu0 0.0
    %311 = vmatprep.subr.mxu0 0.0
    %312 = vmatpush1.msra.mxu0 0.0
    %313 = vmatprep.subr.mxu0 0.0
    %314 = vmatpush1.msra.mxu0 0.0
    %315 = vmatprep.subr.mxu0 0.0
    %316 = vmatpush1.msra.mxu0 0.0
    %317 = vmatprep.subr.mxu0 0.0
    %318 = vmatpush1.msra.mxu0 0.0
    %319 = vmatprep.subr.mxu0 0.0
    %320 = vmatpush1.msra.mxu0 0.0
    %321 = vmatprep.subr.mxu0 0.0
    %322 = vmatpush1.msra.mxu0 0.0
    %323 = vmatprep.subr.mxu0 0.0
    %324 = vmatpush1.msra.mxu0 0.0
    %325 = vmatprep.mubr.f32.mxu0 0.0
    %326 = vmatmul.mubr.f32.gmra.mrb[0].mxu0 %v259
    %v327 = vpop.f32.mrb[0].mxu0
    %v328 = vadd.f32 0.0, %v327
    %v329 = vpop.f32.mrb[0].mxu0
    %330 = vdwg.mxu0
    %v332 = vrot.slane %v328, 7
    %v334 = vadd.f32 %v147, %v332
    %v335 = vmul.f32 %v334, %v155
    %v336 = vtanh.pop %v335
    %v337 = vmul.f32 %v336, %v155
    %v338 = vadd.f32 %v337, %v156
    %v340 = vrot.slane %v252, 7
    %v342 = vmul.f32 %v338, %v340
    %344 = vrot.lane.b32.xlu0 %v338, 96
    %v345 = vpop.permute.xlu0 %344
    %v347 = vmul.f32 %v338, %v345
    %349 = vrot.lane.b32.xlu0 %v347, 96
    %v350 = vpop.permute.xlu0 %349
    %v352 = vadd.f32 %v342, %v350
    %v353 = vtanh.pop %v352
    %354 = vrot.lane.b32.xlu0 %v338, 32
    %v355 = vpop.permute.xlu0 %354
    %v357 = vmul.f32 %v353, %v355
    %v359 = vrot.slane %v357, 1
    %v360 = vsel %vm163, %v359, 0
    %362 = vmatprep.subr.mxu0 0.0
    %363 = vmatpush1.msra.mxu0 %v157
    %364 = vmatprep.subr.mxu0 0.0
    %365 = vmatpush1.msra.mxu0 %v158
    %366 = vmatprep.subr.mxu0 0.0
    %367 = vmatpush1.msra.mxu0 %v159
    %368 = vmatprep.subr.mxu0 0.0
    %369 = vmatpush1.msra.mxu0 %v160
    %370 = vmatprep.subr.mxu0 0.0
    %371 = vmatpush1.msra.mxu0 0.0
    %372 = vmatprep.subr.mxu0 0.0
    %373 = vmatpush1.msra.mxu0 0.0
    %374 = vmatprep.subr.mxu0 0.0
    %375 = vmatpush1.msra.mxu0 0.0
    %376 = vmatprep.subr.mxu0 0.0
    %377 = vmatpush1.msra.mxu0 0.0
    %378 = vmatprep.subr.mxu0 0.0
    %379 = vmatpush1.msra.mxu0 0.0
    %380 = vmatprep.subr.mxu0 0.0
    %381 = vmatpush1.msra.mxu0 0.0
    %382 = vmatprep.subr.mxu0 0.0
    %383 = vmatpush1.msra.mxu0 0.0
    %384 = vmatprep.subr.mxu0 0.0
    %385 = vmatpush1.msra.mxu0 0.0
    %386 = vmatprep.subr.mxu0 0.0
    %387 = vmatpush1.msra.mxu0 0.0
    %388 = vmatprep.subr.mxu0 0.0
    %389 = vmatpush1.msra.mxu0 0.0
    %390 = vmatprep.subr.mxu0 0.0
    %391 = vmatpush1.msra.mxu0 0.0
    %392 = vmatprep.subr.mxu0 0.0
    %393 = vmatpush1.msra.mxu0 0.0
    %394 = vmatprep.subr.mxu0 0.0
    %395 = vmatpush1.msra.mxu0 0.0
    %396 = vmatprep.subr.mxu0 0.0
    %397 = vmatpush1.msra.mxu0 0.0
    %398 = vmatprep.subr.mxu0 0.0
    %399 = vmatpush1.msra.mxu0 0.0
    %400 = vmatprep.subr.mxu0 0.0
    %401 = vmatpush1.msra.mxu0 0.0
    %402 = vmatprep.subr.mxu0 0.0
    %403 = vmatpush1.msra.mxu0 0.0
    %404 = vmatprep.subr.mxu0 0.0
    %405 = vmatpush1.msra.mxu0 0.0
    %406 = vmatprep.subr.mxu0 0.0
    %407 = vmatpush1.msra.mxu0 0.0
    %408 = vmatprep.subr.mxu0 0.0
    %409 = vmatpush1.msra.mxu0 0.0
    %410 = vmatprep.subr.mxu0 0.0
    %411 = vmatpush1.msra.mxu0 0.0
    %412 = vmatprep.subr.mxu0 0.0
    %413 = vmatpush1.msra.mxu0 0.0
    %414 = vmatprep.subr.mxu0 0.0
    %415 = vmatpush1.msra.mxu0 0.0
    %416 = vmatprep.subr.mxu0 0.0
    %417 = vmatpush1.msra.mxu0 0.0
    %418 = vmatprep.subr.mxu0 0.0
    %419 = vmatpush1.msra.mxu0 0.0
    %420 = vmatprep.subr.mxu0 0.0
    %421 = vmatpush1.msra.mxu0 0.0
    %422 = vmatprep.subr.mxu0 0.0
    %423 = vmatpush1.msra.mxu0 0.0
    %424 = vmatprep.subr.mxu0 0.0
    %425 = vmatpush1.msra.mxu0 0.0
    %426 = vmatprep.mubr.f32.mxu0 0.0
    %427 = vmatmul.mubr.f32.gmra.mrb[0].mxu0 %v360
    %v428 = vpop.f32.mrb[0].mxu0
    %v429 = vadd.f32 0.0, %v428
    %v430 = vpop.f32.mrb[0].mxu0
    %431 = vdwg.mxu0
    %v433 = vrot.slane %v429, 6
    %v435 = vadd.f32 %v147, %v433
    %v436 = vmul.f32 %v435, %v155
    %v437 = vtanh.pop %v436
    %v438 = vmul.f32 %v437, %v155
    %v439 = vadd.f32 %v438, %v156
    %v441 = vrot.slane %v352, 7
    %v443 = vmul.f32 %v439, %v441
    %445 = vrot.lane.b32.xlu0 %v439, 96
    %v446 = vpop.permute.xlu0 %445
    %v448 = vmul.f32 %v439, %v446
    %450 = vrot.lane.b32.xlu0 %v448, 96
    %v451 = vpop.permute.xlu0 %450
    %v453 = vadd.f32 %v443, %v451
    %v454 = vtanh.pop %v453
    %455 = vrot.lane.b32.xlu0 %v439, 32
    %v456 = vpop.permute.xlu0 %455
    %v458 = vmul.f32 %v454, %v456
    %v460 = vrot.slane %v458, 2
    %v461 = vsel %vm163, %v460, 0
    %463 = vmatprep.subr.mxu0 0.0
    %464 = vmatpush1.msra.mxu0 %v157
    %465 = vmatprep.subr.mxu0 0.0
    %466 = vmatpush1.msra.mxu0 %v158
    %467 = vmatprep.subr.mxu0 0.0
    %468 = vmatpush1.msra.mxu0 %v159
    %469 = vmatprep.subr.mxu0 0.0
    %470 = vmatpush1.msra.mxu0 %v160
    %471 = vmatprep.subr.mxu0 0.0
    %472 = vmatpush1.msra.mxu0 0.0
    %473 = vmatprep.subr.mxu0 0.0
    %474 = vmatpush1.msra.mxu0 0.0
    %475 = vmatprep.subr.mxu0 0.0
    %476 = vmatpush1.msra.mxu0 0.0
    %477 = vmatprep.subr.mxu0 0.0
    %478 = vmatpush1.msra.mxu0 0.0
    %479 = vmatprep.subr.mxu0 0.0
    %480 = vmatpush1.msra.mxu0 0.0
    %481 = vmatprep.subr.mxu0 0.0
    %482 = vmatpush1.msra.mxu0 0.0
    %483 = vmatprep.subr.mxu0 0.0
    %484 = vmatpush1.msra.mxu0 0.0
    %485 = vmatprep.subr.mxu0 0.0
    %486 = vmatpush1.msra.mxu0 0.0
    %487 = vmatprep.subr.mxu0 0.0
    %488 = vmatpush1.msra.mxu0 0.0
    %489 = vmatprep.subr.mxu0 0.0
    %490 = vmatpush1.msra.mxu0 0.0
    %491 = vmatprep.subr.mxu0 0.0
    %492 = vmatpush1.msra.mxu0 0.0
    %493 = vmatprep.subr.mxu0 0.0
    %494 = vmatpush1.msra.mxu0 0.0
    %495 = vmatprep.subr.mxu0 0.0
    %496 = vmatpush1.msra.mxu0 0.0
    %497 = vmatprep.subr.mxu0 0.0
    %498 = vmatpush1.msra.mxu0 0.0
    %499 = vmatprep.subr.mxu0 0.0
    %500 = vmatpush1.msra.mxu0 0.0
    %501 = vmatprep.subr.mxu0 0.0
    %502 = vmatpush1.msra.mxu0 0.0
    %503 = vmatprep.subr.mxu0 0.0
    %504 = vmatpush1.msra.mxu0 0.0
    %505 = vmatprep.subr.mxu0 0.0
    %506 = vmatpush1.msra.mxu0 0.0
    %507 = vmatprep.subr.mxu0 0.0
    %508 = vmatpush1.msra.mxu0 0.0
    %509 = vmatprep.subr.mxu0 0.0
    %510 = vmatpush1.msra.mxu0 0.0
    %511 = vmatprep.subr.mxu0 0.0
    %512 = vmatpush1.msra.mxu0 0.0
    %513 = vmatprep.subr.mxu0 0.0
    %514 = vmatpush1.msra.mxu0 0.0
    %515 = vmatprep.subr.mxu0 0.0
    %516 = vmatpush1.msra.mxu0 0.0
    %517 = vmatprep.subr.mxu0 0.0
    %518 = vmatpush1.msra.mxu0 0.0
    %519 = vmatprep.subr.mxu0 0.0
    %520 = vmatpush1.msra.mxu0 0.0
    %521 = vmatprep.subr.mxu0 0.0
    %522 = vmatpush1.msra.mxu0 0.0
    %523 = vmatprep.subr.mxu0 0.0
    %524 = vmatpush1.msra.mxu0 0.0
    %525 = vmatprep.subr.mxu0 0.0
    %526 = vmatpush1.msra.mxu0 0.0
    %527 = vmatprep.mubr.f32.mxu0 0.0
    %528 = vmatmul.mubr.f32.gmra.mrb[0].mxu0 %v461
    %v529 = vpop.f32.mrb[0].mxu0
    %v530 = vadd.f32 0.0, %v529
    %v531 = vpop.f32.mrb[0].mxu0
    %532 = vdwg.mxu0
    %v534 = vrot.slane %v530, 5
    %v536 = vadd.f32 %v147, %v534
    %v537 = vmul.f32 %v536, %v155
    %v538 = vtanh.pop %v537
    %v539 = vmul.f32 %v538, %v155
    %v540 = vadd.f32 %v539, %v156
    %v542 = vrot.slane %v453, 7
    %v544 = vmul.f32 %v540, %v542
    %546 = vrot.lane.b32.xlu0 %v540, 96
    %v547 = vpop.permute.xlu0 %546
    %v549 = vmul.f32 %v540, %v547
    %551 = vrot.lane.b32.xlu0 %v549, 96
    %v552 = vpop.permute.xlu0 %551
    %v554 = vadd.f32 %v544, %v552
    %v555 = vtanh.pop %v554
    %556 = vrot.lane.b32.xlu0 %v540, 32
    %v557 = vpop.permute.xlu0 %556
    %v559 = vmul.f32 %v555, %v557
    %v561 = vrot.slane %v559, 3
    %v562 = vsel %vm163, %v561, 0
    %564 = vmatprep.subr.mxu0 0.0
    %565 = vmatpush1.msra.mxu0 %v157
    %566 = vmatprep.subr.mxu0 0.0
    %567 = vmatpush1.msra.mxu0 %v158
    %568 = vmatprep.subr.mxu0 0.0
    %569 = vmatpush1.msra.mxu0 %v159
    %570 = vmatprep.subr.mxu0 0.0
    %571 = vmatpush1.msra.mxu0 %v160
    %572 = vmatprep.subr.mxu0 0.0
    %573 = vmatpush1.msra.mxu0 0.0
    %574 = vmatprep.subr.mxu0 0.0
    %575 = vmatpush1.msra.mxu0 0.0
    %576 = vmatprep.subr.mxu0 0.0
    %577 = vmatpush1.msra.mxu0 0.0
    %578 = vmatprep.subr.mxu0 0.0
    %579 = vmatpush1.msra.mxu0 0.0
    %580 = vmatprep.subr.mxu0 0.0
    %581 = vmatpush1.msra.mxu0 0.0
    %582 = vmatprep.subr.mxu0 0.0
    %583 = vmatpush1.msra.mxu0 0.0
    %584 = vmatprep.subr.mxu0 0.0
    %585 = vmatpush1.msra.mxu0 0.0
    %586 = vmatprep.subr.mxu0 0.0
    %587 = vmatpush1.msra.mxu0 0.0
    %588 = vmatprep.subr.mxu0 0.0
    %589 = vmatpush1.msra.mxu0 0.0
    %590 = vmatprep.subr.mxu0 0.0
    %591 = vmatpush1.msra.mxu0 0.0
    %592 = vmatprep.subr.mxu0 0.0
    %593 = vmatpush1.msra.mxu0 0.0
    %594 = vmatprep.subr.mxu0 0.0
    %595 = vmatpush1.msra.mxu0 0.0
    %596 = vmatprep.subr.mxu0 0.0
    %597 = vmatpush1.msra.mxu0 0.0
    %598 = vmatprep.subr.mxu0 0.0
    %599 = vmatpush1.msra.mxu0 0.0
    %600 = vmatprep.subr.mxu0 0.0
    %601 = vmatpush1.msra.mxu0 0.0
    %602 = vmatprep.subr.mxu0 0.0
    %603 = vmatpush1.msra.mxu0 0.0
    %604 = vmatprep.subr.mxu0 0.0
    %605 = vmatpush1.msra.mxu0 0.0
    %606 = vmatprep.subr.mxu0 0.0
    %607 = vmatpush1.msra.mxu0 0.0
    %608 = vmatprep.subr.mxu0 0.0
    %609 = vmatpush1.msra.mxu0 0.0
    %610 = vmatprep.subr.mxu0 0.0
    %611 = vmatpush1.msra.mxu0 0.0
    %612 = vmatprep.subr.mxu0 0.0
    %613 = vmatpush1.msra.mxu0 0.0
    %614 = vmatprep.subr.mxu0 0.0
    %615 = vmatpush1.msra.mxu0 0.0
    %616 = vmatprep.subr.mxu0 0.0
    %617 = vmatpush1.msra.mxu0 0.0
    %618 = vmatprep.subr.mxu0 0.0
    %619 = vmatpush1.msra.mxu0 0.0
    %620 = vmatprep.subr.mxu0 0.0
    %621 = vmatpush1.msra.mxu0 0.0
    %622 = vmatprep.subr.mxu0 0.0
    %623 = vmatpush1.msra.mxu0 0.0
    %624 = vmatprep.subr.mxu0 0.0
    %625 = vmatpush1.msra.mxu0 0.0
    %626 = vmatprep.subr.mxu0 0.0
    %627 = vmatpush1.msra.mxu0 0.0
    %628 = vmatprep.mubr.f32.mxu0 0.0
    %629 = vmatmul.mubr.f32.gmra.mrb[0].mxu0 %v562
    %v630 = vpop.f32.mrb[0].mxu0
    %v631 = vadd.f32 0.0, %v630
    %v632 = vpop.f32.mrb[0].mxu0
    %633 = vdwg.mxu0
    %v635 = vrot.slane %v631, 4
    %v637 = vadd.f32 %v147, %v635
    %v638 = vmul.f32 %v637, %v155
    %v639 = vtanh.pop %v638
    %v640 = vmul.f32 %v639, %v155
    %v641 = vadd.f32 %v640, %v156
    %v643 = vrot.slane %v554, 7
    %v645 = vmul.f32 %v641, %v643
    %647 = vrot.lane.b32.xlu0 %v641, 96
    %v648 = vpop.permute.xlu0 %647
    %v650 = vmul.f32 %v641, %v648
    %652 = vrot.lane.b32.xlu0 %v650, 96
    %v653 = vpop.permute.xlu0 %652
    %v655 = vadd.f32 %v645, %v653
    %v656 = vtanh.pop %v655
    %657 = vrot.lane.b32.xlu0 %v641, 32
    %v658 = vpop.permute.xlu0 %657
    %v660 = vmul.f32 %v656, %v658
    %v662 = vrot.slane %v660, 4
    %v663 = vsel %vm163, %v662, 0
    %665 = vmatprep.subr.mxu0 0.0
    %666 = vmatpush1.msra.mxu0 %v157
    %667 = vmatprep.subr.mxu0 0.0
    %668 = vmatpush1.msra.mxu0 %v158
    %669 = vmatprep.subr.mxu0 0.0
    %670 = vmatpush1.msra.mxu0 %v159
    %671 = vmatprep.subr.mxu0 0.0
    %672 = vmatpush1.msra.mxu0 %v160
    %673 = vmatprep.subr.mxu0 0.0
    %674 = vmatpush1.msra.mxu0 0.0
    %675 = vmatprep.subr.mxu0 0.0
    %676 = vmatpush1.msra.mxu0 0.0
    %677 = vmatprep.subr.mxu0 0.0
    %678 = vmatpush1.msra.mxu0 0.0
    %679 = vmatprep.subr.mxu0 0.0
    %680 = vmatpush1.msra.mxu0 0.0
    %681 = vmatprep.subr.mxu0 0.0
    %682 = vmatpush1.msra.mxu0 0.0
    %683 = vmatprep.subr.mxu0 0.0
    %684 = vmatpush1.msra.mxu0 0.0
    %685 = vmatprep.subr.mxu0 0.0
    %686 = vmatpush1.msra.mxu0 0.0
    %687 = vmatprep.subr.mxu0 0.0
    %688 = vmatpush1.msra.mxu0 0.0
    %689 = vmatprep.subr.mxu0 0.0
    %690 = vmatpush1.msra.mxu0 0.0
    %691 = vmatprep.subr.mxu0 0.0
    %692 = vmatpush1.msra.mxu0 0.0
    %693 = vmatprep.subr.mxu0 0.0
    %694 = vmatpush1.msra.mxu0 0.0
    %695 = vmatprep.subr.mxu0 0.0
    %696 = vmatpush1.msra.mxu0 0.0
    %697 = vmatprep.subr.mxu0 0.0
    %698 = vmatpush1.msra.mxu0 0.0
    %699 = vmatprep.subr.mxu0 0.0
    %700 = vmatpush1.msra.mxu0 0.0
    %701 = vmatprep.subr.mxu0 0.0
    %702 = vmatpush1.msra.mxu0 0.0
    %703 = vmatprep.subr.mxu0 0.0
    %704 = vmatpush1.msra.mxu0 0.0
    %705 = vmatprep.subr.mxu0 0.0
    %706 = vmatpush1.msra.mxu0 0.0
    %707 = vmatprep.subr.mxu0 0.0
    %708 = vmatpush1.msra.mxu0 0.0
    %709 = vmatprep.subr.mxu0 0.0
    %710 = vmatpush1.msra.mxu0 0.0
    %711 = vmatprep.subr.mxu0 0.0
    %712 = vmatpush1.msra.mxu0 0.0
    %713 = vmatprep.subr.mxu0 0.0
    %714 = vmatpush1.msra.mxu0 0.0
    %715 = vmatprep.subr.mxu0 0.0
    %716 = vmatpush1.msra.mxu0 0.0
    %717 = vmatprep.subr.mxu0 0.0
    %718 = vmatpush1.msra.mxu0 0.0
    %719 = vmatprep.subr.mxu0 0.0
    %720 = vmatpush1.msra.mxu0 0.0
    %721 = vmatprep.subr.mxu0 0.0
    %722 = vmatpush1.msra.mxu0 0.0
    %723 = vmatprep.subr.mxu0 0.0
    %724 = vmatpush1.msra.mxu0 0.0
    %725 = vmatprep.subr.mxu0 0.0
    %726 = vmatpush1.msra.mxu0 0.0
    %727 = vmatprep.subr.mxu0 0.0
    %728 = vmatpush1.msra.mxu0 0.0
    %729 = vmatprep.mubr.f32.mxu0 0.0
    %730 = vmatmul.mubr.f32.gmra.mrb[0].mxu0 %v663
    %v731 = vpop.f32.mrb[0].mxu0
    %v732 = vadd.f32 0.0, %v731
    %v733 = vpop.f32.mrb[0].mxu0
    %734 = vdwg.mxu0
    %v736 = vrot.slane %v732, 3
    %v738 = vadd.f32 %v147, %v736
    %v739 = vmul.f32 %v738, %v155
    %v740 = vtanh.pop %v739
    %v741 = vmul.f32 %v740, %v155
    %v742 = vadd.f32 %v741, %v156
    %v744 = vrot.slane %v655, 7
    %v746 = vmul.f32 %v742, %v744
    %748 = vrot.lane.b32.xlu0 %v742, 96
    %v749 = vpop.permute.xlu0 %748
    %v751 = vmul.f32 %v742, %v749
    %753 = vrot.lane.b32.xlu0 %v751, 96
    %v754 = vpop.permute.xlu0 %753
    %v756 = vadd.f32 %v746, %v754
    %v757 = vtanh.pop %v756
    %758 = vrot.lane.b32.xlu0 %v742, 32
    %v759 = vpop.permute.xlu0 %758
    %v761 = vmul.f32 %v757, %v759
    %v763 = vrot.slane %v761, 5
    %v764 = vsel %vm163, %v763, 0
    %766 = vmatprep.subr.mxu0 0.0
    %767 = vmatpush1.msra.mxu0 %v157
    %768 = vmatprep.subr.mxu0 0.0
    %769 = vmatpush1.msra.mxu0 %v158
    %770 = vmatprep.subr.mxu0 0.0
    %771 = vmatpush1.msra.mxu0 %v159
    %772 = vmatprep.subr.mxu0 0.0
    %773 = vmatpush1.msra.mxu0 %v160
    %774 = vmatprep.subr.mxu0 0.0
    %775 = vmatpush1.msra.mxu0 0.0
    %776 = vmatprep.subr.mxu0 0.0
    %777 = vmatpush1.msra.mxu0 0.0
    %778 = vmatprep.subr.mxu0 0.0
    %779 = vmatpush1.msra.mxu0 0.0
    %780 = vmatprep.subr.mxu0 0.0
    %781 = vmatpush1.msra.mxu0 0.0
    %782 = vmatprep.subr.mxu0 0.0
    %783 = vmatpush1.msra.mxu0 0.0
    %784 = vmatprep.subr.mxu0 0.0
    %785 = vmatpush1.msra.mxu0 0.0
    %786 = vmatprep.subr.mxu0 0.0
    %787 = vmatpush1.msra.mxu0 0.0
    %788 = vmatprep.subr.mxu0 0.0
    %789 = vmatpush1.msra.mxu0 0.0
    %790 = vmatprep.subr.mxu0 0.0
    %791 = vmatpush1.msra.mxu0 0.0
    %792 = vmatprep.subr.mxu0 0.0
    %793 = vmatpush1.msra.mxu0 0.0
    %794 = vmatprep.subr.mxu0 0.0
    %795 = vmatpush1.msra.mxu0 0.0
    %796 = vmatprep.subr.mxu0 0.0
    %797 = vmatpush1.msra.mxu0 0.0
    %798 = vmatprep.subr.mxu0 0.0
    %799 = vmatpush1.msra.mxu0 0.0
    %800 = vmatprep.subr.mxu0 0.0
    %801 = vmatpush1.msra.mxu0 0.0
    %802 = vmatprep.subr.mxu0 0.0
    %803 = vmatpush1.msra.mxu0 0.0
    %804 = vmatprep.subr.mxu0 0.0
    %805 = vmatpush1.msra.mxu0 0.0
    %806 = vmatprep.subr.mxu0 0.0
    %807 = vmatpush1.msra.mxu0 0.0
    %808 = vmatprep.subr.mxu0 0.0
    %809 = vmatpush1.msra.mxu0 0.0
    %810 = vmatprep.subr.mxu0 0.0
    %811 = vmatpush1.msra.mxu0 0.0
    %812 = vmatprep.subr.mxu0 0.0
    %813 = vmatpush1.msra.mxu0 0.0
    %814 = vmatprep.subr.mxu0 0.0
    %815 = vmatpush1.msra.mxu0 0.0
    %816 = vmatprep.subr.mxu0 0.0
    %817 = vmatpush1.msra.mxu0 0.0
    %818 = vmatprep.subr.mxu0 0.0
    %819 = vmatpush1.msra.mxu0 0.0
    %820 = vmatprep.subr.mxu0 0.0
    %821 = vmatpush1.msra.mxu0 0.0
    %822 = vmatprep.subr.mxu0 0.0
    %823 = vmatpush1.msra.mxu0 0.0
    %824 = vmatprep.subr.mxu0 0.0
    %825 = vmatpush1.msra.mxu0 0.0
    %826 = vmatprep.subr.mxu0 0.0
    %827 = vmatpush1.msra.mxu0 0.0
    %828 = vmatprep.subr.mxu0 0.0
    %829 = vmatpush1.msra.mxu0 0.0
    %830 = vmatprep.mubr.f32.mxu0 0.0
    %831 = vmatmul.mubr.f32.gmra.mrb[0].mxu0 %v764
    %v832 = vpop.f32.mrb[0].mxu0
    %v833 = vadd.f32 0.0, %v832
    %v834 = vpop.f32.mrb[0].mxu0
    %835 = vdwg.mxu0
    %v837 = vrot.slane %v833, 2
    %v839 = vadd.f32 %v147, %v837
    %v840 = vmul.f32 %v839, %v155
    %v841 = vtanh.pop %v840
    %v842 = vmul.f32 %v841, %v155
    %v843 = vadd.f32 %v842, %v156
    %v845 = vrot.slane %v756, 7
    %v847 = vmul.f32 %v843, %v845
    %849 = vrot.lane.b32.xlu0 %v843, 96
    %v850 = vpop.permute.xlu0 %849
    %v852 = vmul.f32 %v843, %v850
    %854 = vrot.lane.b32.xlu0 %v852, 96
    %v855 = vpop.permute.xlu0 %854
    %v857 = vadd.f32 %v847, %v855
    %v858 = vtanh.pop %v857
    %859 = vrot.lane.b32.xlu0 %v843, 32
    %v860 = vpop.permute.xlu0 %859
    %v862 = vmul.f32 %v858, %v860
    %v864 = vrot.slane %v862, 6
    %v865 = vsel %vm163, %v864, 0
    %867 = vmatprep.subr.mxu0 0.0
    %868 = vmatpush1.msra.mxu0 %v157
    %869 = vmatprep.subr.mxu0 0.0
    %870 = vmatpush1.msra.mxu0 %v158
    %871 = vmatprep.subr.mxu0 0.0
    %872 = vmatpush1.msra.mxu0 %v159
    %873 = vmatprep.subr.mxu0 0.0
    %874 = vmatpush1.msra.mxu0 %v160
    %875 = vmatprep.subr.mxu0 0.0
    %876 = vmatpush1.msra.mxu0 0.0
    %877 = vmatprep.subr.mxu0 0.0
    %878 = vmatpush1.msra.mxu0 0.0
    %879 = vmatprep.subr.mxu0 0.0
    %880 = vmatpush1.msra.mxu0 0.0
    %881 = vmatprep.subr.mxu0 0.0
    %882 = vmatpush1.msra.mxu0 0.0
    %883 = vmatprep.subr.mxu0 0.0
    %884 = vmatpush1.msra.mxu0 0.0
    %885 = vmatprep.subr.mxu0 0.0
    %886 = vmatpush1.msra.mxu0 0.0
    %887 = vmatprep.subr.mxu0 0.0
    %888 = vmatpush1.msra.mxu0 0.0
    %889 = vmatprep.subr.mxu0 0.0
    %890 = vmatpush1.msra.mxu0 0.0
    %891 = vmatprep.subr.mxu0 0.0
    %892 = vmatpush1.msra.mxu0 0.0
    %893 = vmatprep.subr.mxu0 0.0
    %894 = vmatpush1.msra.mxu0 0.0
    %895 = vmatprep.subr.mxu0 0.0
    %896 = vmatpush1.msra.mxu0 0.0
    %897 = vmatprep.subr.mxu0 0.0
    %898 = vmatpush1.msra.mxu0 0.0
    %899 = vmatprep.subr.mxu0 0.0
    %900 = vmatpush1.msra.mxu0 0.0
    %901 = vmatprep.subr.mxu0 0.0
    %902 = vmatpush1.msra.mxu0 0.0
    %903 = vmatprep.subr.mxu0 0.0
    %904 = vmatpush1.msra.mxu0 0.0
    %905 = vmatprep.subr.mxu0 0.0
    %906 = vmatpush1.msra.mxu0 0.0
    %907 = vmatprep.subr.mxu0 0.0
    %908 = vmatpush1.msra.mxu0 0.0
    %909 = vmatprep.subr.mxu0 0.0
    %910 = vmatpush1.msra.mxu0 0.0
    %911 = vmatprep.subr.mxu0 0.0
    %912 = vmatpush1.msra.mxu0 0.0
    %913 = vmatprep.subr.mxu0 0.0
    %914 = vmatpush1.msra.mxu0 0.0
    %915 = vmatprep.subr.mxu0 0.0
    %916 = vmatpush1.msra.mxu0 0.0
    %917 = vmatprep.subr.mxu0 0.0
    %918 = vmatpush1.msra.mxu0 0.0
    %919 = vmatprep.subr.mxu0 0.0
    %920 = vmatpush1.msra.mxu0 0.0
    %921 = vmatprep.subr.mxu0 0.0
    %922 = vmatpush1.msra.mxu0 0.0
    %923 = vmatprep.subr.mxu0 0.0
    %924 = vmatpush1.msra.mxu0 0.0
    %925 = vmatprep.subr.mxu0 0.0
    %926 = vmatpush1.msra.mxu0 0.0
    %927 = vmatprep.subr.mxu0 0.0
    %928 = vmatpush1.msra.mxu0 0.0
    %929 = vmatprep.subr.mxu0 0.0
    %930 = vmatpush1.msra.mxu0 0.0
    %931 = vmatprep.mubr.f32.mxu0 0.0
    %932 = vmatmul.mubr.f32.gmra.mrb[0].mxu0 %v865
    %v933 = vpop.f32.mrb[0].mxu0
    %v934 = vadd.f32 0.0, %v933
    %v935 = vpop.f32.mrb[0].mxu0
    %936 = vdwg.mxu0
    %v938 = vrot.slane %v934, 1
    %v940 = vadd.f32 %v147, %v938
    %v941 = vmul.f32 %v940, %v155
    %v942 = vtanh.pop %v941
    %v943 = vmul.f32 %v942, %v155
    %v944 = vadd.f32 %v943, %v156
    %v946 = vrot.slane %v857, 7
    %v948 = vmul.f32 %v944, %v946
    %950 = vrot.lane.b32.xlu0 %v944, 96
    %v951 = vpop.permute.xlu0 %950
    %v953 = vmul.f32 %v944, %v951
    %955 = vrot.lane.b32.xlu0 %v953, 96
    %v956 = vpop.permute.xlu0 %955
    %v958 = vadd.f32 %v948, %v956
    %v959 = vtanh.pop %v958
    %960 = vrot.lane.b32.xlu0 %v944, 32
    %v961 = vpop.permute.xlu0 %960
    %v963 = vmul.f32 %v959, %v961
    %vm964 = vcmask 1040384
    %v965 = vsel %vm964, %v257, %v357
    %vm966 = vcmask 1041408
    %v967 = vsel %vm966, %v965, %v458
    %vm968 = vcmask 1042432
    %v969 = vsel %vm968, %v967, %v559
    %vm970 = vcmask 1043456
    %v971 = vsel %vm970, %v969, %v660
    %vm972 = vcmask 1044480
    %v973 = vsel %vm972, %v971, %v761
    %vm974 = vcmask 1045504
    %v975 = vsel %vm974, %v973, %v862
    %vm976 = vcmask 1046528
    %v977 = vsel %vm976, %v975, %v963
    %978 = vst.msk [vmem:[#allocation8] sm:$0xff] %vm163, %v977
    %vm979 = vcmask 261127
    %980 = vst.msk [vmem:[#allocation9 - $0x7] sm:$0x80] %vm979, %v958
    // Predicated region
    $region38: #{tpu_custom_call.1} parent=1 // pred_check
      _
    $region39: #{tpu_custom_call.1} parent=1 // pred_check_branch
      %982 = sbr.rel (0) target = $region41
    $region40: #{tpu_custom_call.1} parent=1 // pred_region
      %s984 = ssub.s32 128, 128
      %985 = vsyncadd [#allocation4], %s984
      %s987 = sshll.u32 [#allocation8], 4
      %s988 = int_to_ptr.vmem [resolvable:$true] %s987
      %990 = dma.vmem_to_hbm [thread:$0]  %s988, 128, %s6, [#allocation4]
    $region41: #{tpu_custom_call.1} parent=1 // pred_fallthru
      _
    // Predicated region
    $region42: #{tpu_custom_call.1} parent=1 // pred_check
      _
    $region43: #{tpu_custom_call.1} parent=1 // pred_check_branch
      %992 = sbr.rel (0) target = $region45
    $region44: #{tpu_custom_call.1} parent=1 // pred_region
      %s994 = ssub.s32 16, 16
      %995 = vsyncadd [#allocation10], %s994
      %s997 = sshll.u32 [#allocation9], 4
      %s998 = int_to_ptr.vmem [resolvable:$true] %s997
      %1000 = dma.vmem_to_hbm [thread:$0]  %s998, 16, %s7, [#allocation10]
    $region45: #{tpu_custom_call.1} parent=1 // pred_fallthru
      _
    // Predicated region
    $region46: #{tpu_custom_call.1} parent=1 // pred_check
      _
    $region47: #{tpu_custom_call.1} parent=1 // pred_check_branch
      %1002 = sbr.rel (0) target = $region49
    $region48: #{tpu_custom_call.1} parent=1 // pred_region
      %1003 = dma.done [#allocation4], 128
    $region49: #{tpu_custom_call.1} parent=1 // pred_fallthru
      _
    // Predicated region
    $region50: #{tpu_custom_call.1} parent=1 // pred_check
      _
    $region51: #{tpu_custom_call.1} parent=1 // pred_check_branch
      %1005 = sbr.rel (0) target = $region53
    $region52: #{tpu_custom_call.1} parent=1 // pred_region
      %1006 = dma.done [#allocation10], 16
    $region53: #{tpu_custom_call.1} parent=1 // pred_fallthru
      _
    %1007 = vsyncpa [#allocation3], 1
    %1008 = vsyncpa [#allocation6], 1
    %1009 = vsyncpa [#allocation4], 1
    %1010 = vsyncpa [#allocation10], 1

</llo_original>
